<compile_context>
chip_gen: v5e
topology: v5e:2x2
jax: 0.10.0
libtpu: 0.0.40
codegen_flags: <defaults>
</compile_context>

<pallas_src>
import functools

import jax
import jax.numpy as jnp
from jax import lax
from jax.experimental import pallas as pl
from jax.experimental.pallas import tpu as pltpu


def _round_up(x, m):
    return ((x + m - 1) // m) * m


# ----------------------------- kernel ----------------------------------------
def _temporal_block_kernel(x_ref, wa_ref, w2a_ref, o_ref, xh_ref, hh_ref, *,
                           tb, Lt, K, d, c_in, c_out, has_downsample,
                           compute_dtype):
    """One grid step: `tb` samples x one `Lt`-wide time block.

    x_ref  : (tb, C_in, Lt)        activations, NCL (time in lanes)
    wa_ref : (M1, K*C_in + 1)      conv1 weight + bias col [+ fused downsample rows]
    w2a_ref: (C_out, K*C_out + 1)  conv2 weight + bias col
    o_ref  : (tb, C_out, Lt)
    xh_ref : (tb, C_in, P)  scratch  causal halo of x  (tail of previous time block)
    hh_ref : (tb, C_out, P) scratch  causal halo of h1 (tail of previous time block)
    """
    P = d * (K - 1)
    t = pl.program_id(1)

    # New batch row -> the causal left-pad is zeros.
    @pl.when(t == 0)
    def _():
        xh_ref[...] = jnp.zeros_like(xh_ref)
        hh_ref[...] = jnp.zeros_like(hh_ref)

    wa = wa_ref[...].astype(compute_dtype)
    w2 = w2a_ref[...].astype(compute_dtype)
    ones_row = jnp.ones((1, tb * Lt), compute_dtype)      # partner of the bias column

    def shift_stack(cur, halo):
        """cur[b]: (C, Lt); halo[b]: (C, P)  ->  (K*C + 1, tb*Lt) im2col RHS.

        Row block j (shift s_j = d*(K-1-j)) holds, at lanes [b*Lt, (b+1)*Lt),
        sample b delayed by s_j; the first s_j columns come from the halo
        (previous time block, zeros at t==0).  Last row is all ones (bias).
        The Python loops only assemble slices feeding ONE concat that streams
        into a single MXU contraction -- matmuls / elementwise are batched.
        """
        rows = []
        for j in range(K):
            s = d * (K - 1 - j)
            if s == 0:
                rows.append(jnp.concatenate(cur, axis=1))
            else:
                rows.append(jnp.concatenate(
                    [jnp.concatenate([halo[b][:, P - s:], cur[b][:, :Lt - s]],
                                     axis=1) for b in range(tb)],
                    axis=1))
        return jnp.concatenate(rows + [ones_row], axis=0)

    # ---- conv1 (+ bias, + fused 1x1 downsample rows) -------------------------
    x_cur = [x_ref[b].astype(compute_dtype) for b in range(tb)]
    x_hal = [xh_ref[b].astype(compute_dtype) for b in range(tb)]
    y1 = jnp.dot(wa, shift_stack(x_cur, x_hal),
                 preferred_element_type=jnp.float32)       # (M1, tb*Lt) f32
    h1 = jnp.maximum(y1[:c_out], 0.0)                      # relu1; dropout1 = id (eval)

    # ---- conv2 (+ bias) -------------------------------------------------------
    h1_cur = [h1[:, b * Lt:(b + 1) * Lt].astype(compute_dtype) for b in range(tb)]
    h1_hal = [hh_ref[b].astype(compute_dtype) for b in range(tb)]
    y2 = jnp.dot(w2, shift_stack(h1_cur, h1_hal),
                 preferred_element_type=jnp.float32)       # (C_out, tb*Lt) f32
    h2 = jnp.maximum(y2, 0.0)                              # relu2; dropout2 = id (eval)

    # ---- residual + final relu, lane-dense per-sample stores ------------------
    if has_downsample:
        out = jnp.maximum(h2 + y1[c_out:], 0.0)            # residual rows of the fused matmul
        for b in range(tb):
            o_ref[b] = out[:, b * Lt:(b + 1) * Lt].astype(o_ref.dtype)
    else:
        for b in range(tb):                                # identity residual, exact x
            o_ref[b] = jnp.maximum(h2[:, b * Lt:(b + 1) * Lt]
                                   + x_ref[b].astype(jnp.float32),
                                   0.0).astype(o_ref.dtype)

    # ---- carry the causal halos to the next time block ------------------------
    for b in range(tb):
        xh_ref[b] = x_ref[b][:, Lt - P:]
        hh_ref[b] = h1[:, b * Lt + (Lt - P):(b + 1) * Lt]


# ----------------------------- wrapper ----------------------------------------
def _pick_batch_tile(B, requested, per_sample_bytes, budget_bytes):
    cap = max(1, int(budget_bytes // max(per_sample_bytes, 1)))
    t = int(max(1, min(int(requested), cap, B)))
    while B % t:          # NOTE: prime B silently degrades toward tb=1; pad B upstream if that matters
        t -= 1
    while t > 1 and B // t < 2:   # keep >= 2 batch grid steps (v7x megacore split)
        t -= 1
        while B % t:
            t -= 1
    return t


def temporal_block_forward(x_ncl, w1, b1, w2, b2, wd=None, bd=None, *,
                           kernel_size, dilation, padding,
                           batch_tile=4, time_tile=None,
                           compute_dtype=jnp.float32,
                           vmem_budget_bytes=None):
    """TemporalBlock forward (eval mode). x_ncl: (B, C_in, L), PyTorch NCL layout.

    Returns (B, C_out, L) with the dtype of x_ncl.  Passing bf16 activations
    halves both big HBM streams (all accumulation, bias, ReLU and the residual
    add stay in f32); compute_dtype=jnp.bfloat16 additionally runs the MXU
    contractions in bf16 (valid on v5e/v6e/v7x).  stride == 1 only.
    """
    B, C_in, L = x_ncl.shape
    C_out = w1.shape[0]
    K, d, p = int(kernel_size), int(dilation), int(padding)
    if p != d * (K - 1) or p < 1:
        raise ValueError("TemporalBlock requires padding == dilation*(kernel_size-1) >= 1")
    has_downsample = (C_in != C_out)
    if has_downsample and (wd is None or bd is None):
        raise ValueError("C_in != C_out requires downsample weights wd/bd")
    P = p

    # ---- time tiling: lane-dense (multiple of 128); halo carry needs Lt > P ---
    if time_tile is None:
        time_tile = 1024
    L128 = _round_up(L, 128)
    Lt = _round_up(min(int(time_tile), L128), 128)
    Lt = max(Lt, _round_up(P + 1, 128))
    L_pad = _round_up(L, Lt)
    n_t = L_pad // Lt
    assert Lt > P, "time tile must exceed the causal receptive field d*(k-1)"

    # ---- im2col weights: bias folded as an extra column; 1x1 downsample folded
    #      as extra rows against the shift-0 tap (tap K-1) ----------------------
    w1f = jnp.transpose(w1, (0, 2, 1)).reshape(C_out, K * C_in).astype(jnp.float32)
    wa = jnp.concatenate([w1f, b1.reshape(C_out, 1).astype(jnp.float32)], axis=1)
    if has_downsample:
        ds = jnp.zeros((C_out, K * C_in + 1), jnp.float32)
        ds = ds.at[:, (K - 1) * C_in:K * C_in].set(wd[:, :, 0].astype(jnp.float32))
        ds = ds.at[:, -1].set(bd.astype(jnp.float32))
        wa = jnp.concatenate([wa, ds], axis=0)             # (2*C_out, K*C_in + 1)
    w2f = jnp.transpose(w2, (0, 2, 1)).reshape(C_out, K * C_out).astype(jnp.float32)
    w2a = jnp.concatenate([w2f, b2.reshape(C_out, 1).astype(jnp.float32)], axis=1)

    # ---- VMEM budgeting: pick batch tile and the scoped VMEM limit ------------
    act_item = jnp.dtype(x_ncl.dtype).itemsize
    per_sample_step = Lt * (
        2 * (C_in + C_out) * act_item                      # double-buffered in/out blocks
        + (K * C_in + K * C_out + 4 * C_out + 2) * 4)      # im2col stacks + f32 temporaries
    try:
        vmem_cap = int(getattr(pltpu.get_tpu_info(), "vmem_capacity_bytes",
                               64 * 1024 * 1024))          # 64 MiB on v7x, 128 MiB v5e/v6e
    except Exception:
        vmem_cap = 64 * 1024 * 1024
    if vmem_budget_bytes is None:
        vmem_budget_bytes = int(0.55 * vmem_cap)
    tb = _pick_batch_tile(B, batch_tile, per_sample_step, vmem_budget_bytes)

    weight_bytes = 4 * (wa.size + w2a.size)
    halo_bytes = tb * (C_in * act_item + C_out * 4) * P
    est = tb * per_sample_step + 4 * weight_bytes + halo_bytes
    vmem_limit = int(min(int(0.9 * vmem_cap), max(32 * 1024 * 1024, 2 * est)))

    # Right-pad L so every output store is lane-dense; harmless for a causal
    # conv (padded tail sliced off below).  No-op when L is already aligned.
    x_in = x_ncl if L_pad == L else jnp.pad(x_ncl, ((0, 0), (0, 0), (0, L_pad - L)))

    grid = (B // tb, n_t)

    kernel = functools.partial(
        _temporal_block_kernel, tb=tb, Lt=Lt, K=K, d=d, c_in=C_in, c_out=C_out,
        has_downsample=has_downsample, compute_dtype=compute_dtype)

    out = pl.pallas_call(
        kernel,
        out_shape=jax.ShapeDtypeStruct((B, C_out, L_pad), x_ncl.dtype),
        grid_spec=pltpu.PrefetchScalarGridSpec(
            num_scalar_prefetch=0,
            grid=grid,
            in_specs=[
                pl.BlockSpec((tb, C_in, Lt), lambda g, t: (g, 0, t)),
                # TODO(synk): pipeline_mode=pl.Buffered(1) on these constant
                # weight operands would return a little VMEM for very deep TCNs.
                pl.BlockSpec(wa.shape, lambda g, t: (0, 0)),
                pl.BlockSpec(w2a.shape, lambda g, t: (0, 0)),
            ],
            out_specs=pl.BlockSpec((tb, C_out, Lt), lambda g, t: (g, 0, t)),
            scratch_shapes=[
                pltpu.VMEM((tb, C_in, P), x_ncl.dtype),    # x causal halo
                pltpu.VMEM((tb, C_out, P), jnp.float32),   # h1 causal halo
            ],
        ),
        compiler_params=pltpu.CompilerParams(
            dimension_semantics=("parallel", "arbitrary"),
            vmem_limit_bytes=vmem_limit),
    )(x_in, wa, w2a)

    return out if L_pad == L else out[:, :, :L]


# ------------------------------ parameter init --------------------------------
def weight_norm_effective(v):
    """PyTorch weight_norm at init: g = ||v|| per out-channel, so w = g*v/||v|| == v."""
    norm = jnp.sqrt(jnp.sum(v * v, axis=(1, 2), keepdims=True))
    norm = jnp.maximum(norm, 1e-12)
    return norm * v / norm


def init_params(key, n_inputs, n_outputs, kernel_size):
    ks = jax.random.split(key, 6)
    # conv1: Normal(0, 0.001); weight[:, 0, :] += 1/k ; bias Normal(0, 1e-6)
    v1 = 0.001 * jax.random.normal(ks[0], (n_outputs, n_inputs, kernel_size), jnp.float32)
    v1 = v1.at[:, 0, :].add(1.0 / kernel_size)
    b1 = 1e-6 * jax.random.normal(ks[1], (n_outputs,), jnp.float32)
    # conv2: Normal(0, 0.001) + 1/k everywhere ; bias Normal(0, 1e-6)
    v2 = 0.001 * jax.random.normal(ks[2], (n_outputs, n_outputs, kernel_size), jnp.float32)
    v2 = v2 + 1.0 / kernel_size
    b2 = 1e-6 * jax.random.normal(ks[3], (n_outputs,), jnp.float32)
    w1 = weight_norm_effective(v1)
    w2 = weight_norm_effective(v2)
    # downsample 1x1 conv: weight Normal(0, 0.1); small deterministic bias for the demo
    wd = 0.1 * jax.random.normal(ks[4], (n_outputs, n_inputs, 1), jnp.float32)
    bd = 0.01 * jax.random.normal(ks[5], (n_outputs,), jnp.float32)
    return w1, b1, w2, b2, wd, bd


# ------------------------------ pure-JAX reference -----------------------------
def reference_forward(x_ncl, w1, b1, w2, b2, wd, bd, *, dilation, padding):
    def conv1d(x, w, b, dil, p):
        y = lax.conv_general_dilated(
            x, w, window_strides=(1,), padding=[(p, p)], rhs_dilation=(dil,),
            dimension_numbers=("NCH", "OIH", "NCH"))
        return y + b[None, :, None]

    p = padding
    h1 = jax.nn.relu(conv1d(x_ncl, w1, b1, dilation, p)[:, :, :-p])
    h2 = jax.nn.relu(conv1d(h1, w2, b2, dilation, p)[:, :, :-p])
    if x_ncl.shape[1] != w1.shape[0]:
        res = conv1d(x_ncl, wd, bd, 1, 0)
    else:
        res = x_ncl
    return jax.nn.relu(h2 + res)


if __name__ == "__main__":
    # Small DeepGLO-style config: k=3, dilation=2, padding=(k-1)*dilation=4,
    # batch=4, seq len=256, time_tile=128 -> grid (2, 2): exercises the causal
    # halo carry across time blocks, the megacore batch split, and the fused
    # downsample path.
    B, C_IN, C_OUT, L = 4, 8, 16, 256
    K, DIL = 3, 2
    PAD = (K - 1) * DIL

    key = jax.random.PRNGKey(0)
    k_x, k_p, k_p2 = jax.random.split(key, 3)
    x = jax.random.normal(k_x, (B, C_IN, L), jnp.float32)
    w1, b1, w2, b2, wd, bd = init_params(k_p, C_IN, C_OUT, K)

    out = temporal_block_forward(x, w1, b1, w2, b2, wd, bd,
                                 kernel_size=K, dilation=DIL, padding=PAD,
                                 batch_tile=2, time_tile=128)
    out = jax.block_until_ready(out)
    ref = reference_forward(x, w1, b1, w2, b2, wd, bd, dilation=DIL, padding=PAD)
    assert out.shape == (B, C_OUT, L), out.shape
    assert jnp.allclose(out, ref, atol=1e-4, rtol=1e-4), (
        float(jnp.max(jnp.abs(out - ref))))

    # Identity-residual path (C_in == C_out, no downsample).
    x2 = jax.random.normal(jax.random.fold_in(k_x, 1), (B, C_OUT, L), jnp.float32)
    w1b, b1b, w2b, b2b, _, _ = init_params(k_p2, C_OUT, C_OUT, K)
    out2 = temporal_block_forward(x2, w1b, b1b, w2b, b2b,
                                  kernel_size=K, dilation=DIL, padding=PAD,
                                  batch_tile=2, time_tile=128)
    out2 = jax.block_until_ready(out2)
    ref2 = reference_forward(x2, w1b, b1b, w2b, b2b, None, None,
                             dilation=DIL, padding=PAD)
    assert out2.shape == (B, C_OUT, L), out2.shape
    assert jnp.allclose(out2, ref2, atol=1e-4, rtol=1e-4), (
        float(jnp.max(jnp.abs(out2 - ref2))))

    print("KERNEL_OK")
</pallas_src>

<mosaic_0001>
module attributes {stable_mosaic.version = 11 : i64} {
  func.func @_temporal_block_kernel(%arg0: i32, %arg1: i32, %arg2: memref<2x8x128xf32, #tpu.memory_space<vmem>>, %arg3: memref<32x25xf32, #tpu.memory_space<vmem>>, %arg4: memref<16x49xf32, #tpu.memory_space<vmem>>, %arg5: memref<2x16x128xf32, #tpu.memory_space<vmem>>, %arg6: memref<2x8x4xf32, #tpu.memory_space<vmem>>, %arg7: memref<2x16x4xf32, #tpu.memory_space<vmem>>) attributes {dimension_semantics = [#tpu.dimension_semantics<parallel>, #tpu.dimension_semantics<arbitrary>], iteration_bounds = array<i64: 2, 2>, scalar_prefetch = 0 : i64, scratch_operands = 2 : i64, tpu.core_type = #tpu.core_type<tc>, window_params = [{transform_indices = @transform_0, window_bounds = array<i64: 2, 8, 128>}, {pipeline_mode = #tpu.pipeline_mode<synchronous>, transform_indices = @transform_1, window_bounds = array<i64: 32, 25>}, {pipeline_mode = #tpu.pipeline_mode<synchronous>, transform_indices = @transform_2, window_bounds = array<i64: 16, 49>}, {transform_indices = @transform_3, window_bounds = array<i64: 2, 16, 128>}]} {
    %c0_i32 = arith.constant 0 : i32
    %0 = arith.cmpi eq, %arg1, %c0_i32 : i32
    %1 = arith.extui %0 : i1 to i32
    %c0_i32_0 = arith.constant 0 : i32
    %2 = arith.cmpi ne, %1, %c0_i32_0 : i32
    scf.if %2 {
      %cst_50 = arith.constant 0.000000e+00 : f32
      %87 = vector.broadcast %cst_50 : f32 to vector<2x8x4xf32>
      %c0_51 = arith.constant 0 : index
      %c0_52 = arith.constant 0 : index
      %c0_53 = arith.constant 0 : index
      %88 = vector.load %arg6[%c0_51, %c0_52, %c0_53] : memref<2x8x4xf32, #tpu.memory_space<vmem>>, vector<2x8x4xf32>
      tpu.vector_store %arg6[%c0_51, %c0_52, %c0_53], %87 {strides = array<i32>} : memref<2x8x4xf32, #tpu.memory_space<vmem>>, vector<2x8x4xf32>,
      %cst_54 = arith.constant 0.000000e+00 : f32
      %89 = vector.broadcast %cst_54 : f32 to vector<2x16x4xf32>
      %c0_55 = arith.constant 0 : index
      %c0_56 = arith.constant 0 : index
      %c0_57 = arith.constant 0 : index
      %90 = vector.load %arg7[%c0_55, %c0_56, %c0_57] : memref<2x16x4xf32, #tpu.memory_space<vmem>>, vector<2x16x4xf32>
      tpu.vector_store %arg7[%c0_55, %c0_56, %c0_57], %89 {strides = array<i32>} : memref<2x16x4xf32, #tpu.memory_space<vmem>>, vector<2x16x4xf32>,
    } else {
    }
    %c0 = arith.constant 0 : index
    %c0_1 = arith.constant 0 : index
    %3 = vector.load %arg3[%c0, %c0_1] : memref<32x25xf32, #tpu.memory_space<vmem>>, vector<32x25xf32>
    %c0_2 = arith.constant 0 : index
    %c0_3 = arith.constant 0 : index
    %4 = vector.load %arg4[%c0_2, %c0_3] : memref<16x49xf32, #tpu.memory_space<vmem>>, vector<16x49xf32>
    %cst = arith.constant 1.000000e+00 : f32
    %5 = vector.broadcast %cst : f32 to vector<1x256xf32>
    %c0_4 = arith.constant 0 : index
    %c0_5 = arith.constant 0 : index
    %c0_6 = arith.constant 0 : index
    %6 = vector.load %arg2[%c0_4, %c0_5, %c0_6] : memref<2x8x128xf32, #tpu.memory_space<vmem>>, vector<1x8x128xf32>
    %7 = vector.shape_cast %6 : vector<1x8x128xf32> to vector<8x128xf32>
    %c1 = arith.constant 1 : index
    %c0_7 = arith.constant 0 : index
    %c0_8 = arith.constant 0 : index
    %8 = vector.load %arg2[%c1, %c0_7, %c0_8] : memref<2x8x128xf32, #tpu.memory_space<vmem>>, vector<1x8x128xf32>
    %9 = vector.shape_cast %8 : vector<1x8x128xf32> to vector<8x128xf32>
    %c0_9 = arith.constant 0 : index
    %c0_10 = arith.constant 0 : index
    %c0_11 = arith.constant 0 : index
    %10 = vector.load %arg6[%c0_9, %c0_10, %c0_11] : memref<2x8x4xf32, #tpu.memory_space<vmem>>, vector<1x8x4xf32>
    %11 = vector.shape_cast %10 : vector<1x8x4xf32> to vector<8x4xf32>
    %c1_12 = arith.constant 1 : index
    %c0_13 = arith.constant 0 : index
    %c0_14 = arith.constant 0 : index
    %12 = vector.load %arg6[%c1_12, %c0_13, %c0_14] : memref<2x8x4xf32, #tpu.memory_space<vmem>>, vector<1x8x4xf32>
    %13 = vector.shape_cast %12 : vector<1x8x4xf32> to vector<8x4xf32>
    %14 = vector.extract_strided_slice %7 {offsets = [0, 0], sizes = [8, 124], strides = [1, 1]} : vector<8x128xf32> to vector<8x124xf32>
    %15 = tpu.concatenate %11, %14 in 1 : vector<8x4xf32>, vector<8x124xf32> -> vector<8x128xf32>
    %16 = vector.extract_strided_slice %9 {offsets = [0, 0], sizes = [8, 124], strides = [1, 1]} : vector<8x128xf32> to vector<8x124xf32>
    %17 = tpu.concatenate %13, %16 in 1 : vector<8x4xf32>, vector<8x124xf32> -> vector<8x128xf32>
    %18 = tpu.concatenate %15, %17 in 1 : vector<8x128xf32>, vector<8x128xf32> -> vector<8x256xf32>
    %19 = vector.extract_strided_slice %11 {offsets = [0, 2], sizes = [8, 2], strides = [1, 1]} : vector<8x4xf32> to vector<8x2xf32>
    %20 = vector.extract_strided_slice %7 {offsets = [0, 0], sizes = [8, 126], strides = [1, 1]} : vector<8x128xf32> to vector<8x126xf32>
    %21 = tpu.concatenate %19, %20 in 1 : vector<8x2xf32>, vector<8x126xf32> -> vector<8x128xf32>
    %22 = vector.extract_strided_slice %13 {offsets = [0, 2], sizes = [8, 2], strides = [1, 1]} : vector<8x4xf32> to vector<8x2xf32>
    %23 = vector.extract_strided_slice %9 {offsets = [0, 0], sizes = [8, 126], strides = [1, 1]} : vector<8x128xf32> to vector<8x126xf32>
    %24 = tpu.concatenate %22, %23 in 1 : vector<8x2xf32>, vector<8x126xf32> -> vector<8x128xf32>
    %25 = tpu.concatenate %21, %24 in 1 : vector<8x128xf32>, vector<8x128xf32> -> vector<8x256xf32>
    %26 = tpu.concatenate %7, %9 in 1 : vector<8x128xf32>, vector<8x128xf32> -> vector<8x256xf32>
    %27 = tpu.concatenate %18, %25, %26, %5 in 0 : vector<8x256xf32>, vector<8x256xf32>, vector<8x256xf32>, vector<1x256xf32> -> vector<25x256xf32>
    %cst_15 = arith.constant dense<0.000000e+00> : vector<32x256xf32>
    %28 = tpu.matmul %3, %27, %cst_15 {dimension_numbers = #tpu.dot_dimension_numbers<[1], [0], [0], [1], [0, 0, 1, 1], [], []>} : vector<32x25xf32>, vector<25x256xf32>, vector<32x256xf32> -> vector<32x256xf32>
    %29 = vector.extract_strided_slice %28 {offsets = [0, 0], sizes = [16, 256], strides = [1, 1]} : vector<32x256xf32> to vector<16x256xf32>
    %cst_16 = arith.constant 0.000000e+00 : f32
    %30 = vector.broadcast %cst_16 : f32 to vector<16x256xf32>
    %31 = arith.maximumf %29, %30 : vector<16x256xf32>
    %32 = vector.extract_strided_slice %31 {offsets = [0, 0], sizes = [16, 128], strides = [1, 1]} : vector<16x256xf32> to vector<16x128xf32>
    %33 = vector.extract_strided_slice %31 {offsets = [0, 128], sizes = [16, 128], strides = [1, 1]} : vector<16x256xf32> to vector<16x128xf32>
    %c0_17 = arith.constant 0 : index
    %c0_18 = arith.constant 0 : index
    %c0_19 = arith.constant 0 : index
    %34 = vector.load %arg7[%c0_17, %c0_18, %c0_19] : memref<2x16x4xf32, #tpu.memory_space<vmem>>, vector<1x16x4xf32>
    %35 = vector.shape_cast %34 : vector<1x16x4xf32> to vector<16x4xf32>
    %c1_20 = arith.constant 1 : index
    %c0_21 = arith.constant 0 : index
    %c0_22 = arith.constant 0 : index
    %36 = vector.load %arg7[%c1_20, %c0_21, %c0_22] : memref<2x16x4xf32, #tpu.memory_space<vmem>>, vector<1x16x4xf32>
    %37 = vector.shape_cast %36 : vector<1x16x4xf32> to vector<16x4xf32>
    %38 = vector.extract_strided_slice %32 {offsets = [0, 0], sizes = [16, 124], strides = [1, 1]} : vector<16x128xf32> to vector<16x124xf32>
    %39 = tpu.concatenate %35, %38 in 1 : vector<16x4xf32>, vector<16x124xf32> -> vector<16x128xf32>
    %40 = vector.extract_strided_slice %33 {offsets = [0, 0], sizes = [16, 124], strides = [1, 1]} : vector<16x128xf32> to vector<16x124xf32>
    %41 = tpu.concatenate %37, %40 in 1 : vector<16x4xf32>, vector<16x124xf32> -> vector<16x128xf32>
    %42 = tpu.concatenate %39, %41 in 1 : vector<16x128xf32>, vector<16x128xf32> -> vector<16x256xf32>
    %43 = vector.extract_strided_slice %35 {offsets = [0, 2], sizes = [16, 2], strides = [1, 1]} : vector<16x4xf32> to vector<16x2xf32>
    %44 = vector.extract_strided_slice %32 {offsets = [0, 0], sizes = [16, 126], strides = [1, 1]} : vector<16x128xf32> to vector<16x126xf32>
    %45 = tpu.concatenate %43, %44 in 1 : vector<16x2xf32>, vector<16x126xf32> -> vector<16x128xf32>
    %46 = vector.extract_strided_slice %37 {offsets = [0, 2], sizes = [16, 2], strides = [1, 1]} : vector<16x4xf32> to vector<16x2xf32>
    %47 = vector.extract_strided_slice %33 {offsets = [0, 0], sizes = [16, 126], strides = [1, 1]} : vector<16x128xf32> to vector<16x126xf32>
    %48 = tpu.concatenate %46, %47 in 1 : vector<16x2xf32>, vector<16x126xf32> -> vector<16x128xf32>
    %49 = tpu.concatenate %45, %48 in 1 : vector<16x128xf32>, vector<16x128xf32> -> vector<16x256xf32>
    %50 = tpu.concatenate %32, %33 in 1 : vector<16x128xf32>, vector<16x128xf32> -> vector<16x256xf32>
    %51 = tpu.concatenate %42, %49, %50, %5 in 0 : vector<16x256xf32>, vector<16x256xf32>, vector<16x256xf32>, vector<1x256xf32> -> vector<49x256xf32>
    %cst_23 = arith.constant dense<0.000000e+00> : vector<16x256xf32>
    %52 = tpu.matmul %4, %51, %cst_23 {dimension_numbers = #tpu.dot_dimension_numbers<[1], [0], [0], [1], [0, 0, 1, 1], [], []>} : vector<16x49xf32>, vector<49x256xf32>, vector<16x256xf32> -> vector<16x256xf32>
    %cst_24 = arith.constant 0.000000e+00 : f32
    %53 = vector.broadcast %cst_24 : f32 to vector<16x256xf32>
    %54 = arith.maximumf %52, %53 : vector<16x256xf32>
    %55 = vector.extract_strided_slice %28 {offsets = [16, 0], sizes = [16, 256], strides = [1, 1]} : vector<32x256xf32> to vector<16x256xf32>
    %56 = arith.addf %54, %55 : vector<16x256xf32>
    %cst_25 = arith.constant 0.000000e+00 : f32
    %57 = vector.broadcast %cst_25 : f32 to vector<16x256xf32>
    %58 = arith.maximumf %56, %57 : vector<16x256xf32>
    %59 = vector.extract_strided_slice %58 {offsets = [0, 0], sizes = [16, 128], strides = [1, 1]} : vector<16x256xf32> to vector<16x128xf32>
    %c0_26 = arith.constant 0 : index
    %c0_27 = arith.constant 0 : index
    %c0_28 = arith.constant 0 : index
    %60 = vector.load %arg5[%c0_26, %c0_27, %c0_28] : memref<2x16x128xf32, #tpu.memory_space<vmem>>, vector<1x16x128xf32>
    %61 = vector.shape_cast %60 : vector<1x16x128xf32> to vector<16x128xf32>
    %62 = vector.shape_cast %59 : vector<16x128xf32> to vector<1x16x128xf32>
    tpu.vector_store %arg5[%c0_26, %c0_27, %c0_28], %62 {strides = array<i32>} : memref<2x16x128xf32, #tpu.memory_space<vmem>>, vector<1x16x128xf32>,
    %63 = vector.extract_strided_slice %58 {offsets = [0, 128], sizes = [16, 128], strides = [1, 1]} : vector<16x256xf32> to vector<16x128xf32>
    %c1_29 = arith.constant 1 : index
    %c0_30 = arith.constant 0 : index
    %c0_31 = arith.constant 0 : index
    %64 = vector.load %arg5[%c1_29, %c0_30, %c0_31] : memref<2x16x128xf32, #tpu.memory_space<vmem>>, vector<1x16x128xf32>
    %65 = vector.shape_cast %64 : vector<1x16x128xf32> to vector<16x128xf32>
    %66 = vector.shape_cast %63 : vector<16x128xf32> to vector<1x16x128xf32>
    tpu.vector_store %arg5[%c1_29, %c0_30, %c0_31], %66 {strides = array<i32>} : memref<2x16x128xf32, #tpu.memory_space<vmem>>, vector<1x16x128xf32>,
    %c0_32 = arith.constant 0 : index
    %c0_33 = arith.constant 0 : index
    %c0_34 = arith.constant 0 : index
    %67 = vector.load %arg2[%c0_32, %c0_33, %c0_34] : memref<2x8x128xf32, #tpu.memory_space<vmem>>, vector<1x8x128xf32>
    %68 = vector.shape_cast %67 : vector<1x8x128xf32> to vector<8x128xf32>
    %69 = vector.extract_strided_slice %68 {offsets = [0, 124], sizes = [8, 4], strides = [1, 1]} : vector<8x128xf32> to vector<8x4xf32>
    %c0_35 = arith.constant 0 : index
    %c0_36 = arith.constant 0 : index
    %c0_37 = arith.constant 0 : index
    %70 = vector.load %arg6[%c0_35, %c0_36, %c0_37] : memref<2x8x4xf32, #tpu.memory_space<vmem>>, vector<1x8x4xf32>
    %71 = vector.shape_cast %70 : vector<1x8x4xf32> to vector<8x4xf32>
    %72 = vector.shape_cast %69 : vector<8x4xf32> to vector<1x8x4xf32>
    tpu.vector_store %arg6[%c0_35, %c0_36, %c0_37], %72 {strides = array<i32>} : memref<2x8x4xf32, #tpu.memory_space<vmem>>, vector<1x8x4xf32>,
    %73 = vector.extract_strided_slice %31 {offsets = [0, 124], sizes = [16, 4], strides = [1, 1]} : vector<16x256xf32> to vector<16x4xf32>
    %c0_38 = arith.constant 0 : index
    %c0_39 = arith.constant 0 : index
    %c0_40 = arith.constant 0 : index
    %74 = vector.load %arg7[%c0_38, %c0_39, %c0_40] : memref<2x16x4xf32, #tpu.memory_space<vmem>>, vector<1x16x4xf32>
    %75 = vector.shape_cast %74 : vector<1x16x4xf32> to vector<16x4xf32>
    %76 = vector.shape_cast %73 : vector<16x4xf32> to vector<1x16x4xf32>
    tpu.vector_store %arg7[%c0_38, %c0_39, %c0_40], %76 {strides = array<i32>} : memref<2x16x4xf32, #tpu.memory_space<vmem>>, vector<1x16x4xf32>,
    %c1_41 = arith.constant 1 : index
    %c0_42 = arith.constant 0 : index
    %c0_43 = arith.constant 0 : index
    %77 = vector.load %arg2[%c1_41, %c0_42, %c0_43] : memref<2x8x128xf32, #tpu.memory_space<vmem>>, vector<1x8x128xf32>
    %78 = vector.shape_cast %77 : vector<1x8x128xf32> to vector<8x128xf32>
    %79 = vector.extract_strided_slice %78 {offsets = [0, 124], sizes = [8, 4], strides = [1, 1]} : vector<8x128xf32> to vector<8x4xf32>
    %c1_44 = arith.constant 1 : index
    %c0_45 = arith.constant 0 : index
    %c0_46 = arith.constant 0 : index
    %80 = vector.load %arg6[%c1_44, %c0_45, %c0_46] : memref<2x8x4xf32, #tpu.memory_space<vmem>>, vector<1x8x4xf32>
    %81 = vector.shape_cast %80 : vector<1x8x4xf32> to vector<8x4xf32>
    %82 = vector.shape_cast %79 : vector<8x4xf32> to vector<1x8x4xf32>
    tpu.vector_store %arg6[%c1_44, %c0_45, %c0_46], %82 {strides = array<i32>} : memref<2x8x4xf32, #tpu.memory_space<vmem>>, vector<1x8x4xf32>,
    %83 = vector.extract_strided_slice %31 {offsets = [0, 252], sizes = [16, 4], strides = [1, 1]} : vector<16x256xf32> to vector<16x4xf32>
    %c1_47 = arith.constant 1 : index
    %c0_48 = arith.constant 0 : index
    %c0_49 = arith.constant 0 : index
    %84 = vector.load %arg7[%c1_47, %c0_48, %c0_49] : memref<2x16x4xf32, #tpu.memory_space<vmem>>, vector<1x16x4xf32>
    %85 = vector.shape_cast %84 : vector<1x16x4xf32> to vector<16x4xf32>
    %86 = vector.shape_cast %83 : vector<16x4xf32> to vector<1x16x4xf32>
    tpu.vector_store %arg7[%c1_47, %c0_48, %c0_49], %86 {strides = array<i32>} : memref<2x16x4xf32, #tpu.memory_space<vmem>>, vector<1x16x4xf32>,
    return
  }
  func.func @transform_0(%arg0: i32, %arg1: i32) -> (i32, i32, i32) {
    %c0_i32 = arith.constant 0 : i32
    %c0_i32_0 = arith.constant 0 : i32
    return %arg0, %c0_i32, %arg1 : i32, i32, i32
  }
  func.func @transform_1(%arg0: i32, %arg1: i32) -> (i32, i32) {
    %c0_i32 = arith.constant 0 : i32
    %c0_i32_0 = arith.constant 0 : i32
    %c0_i32_1 = arith.constant 0 : i32
    return %c0_i32, %c0_i32_0 : i32, i32
  }
  func.func @transform_2(%arg0: i32, %arg1: i32) -> (i32, i32) {
    %c0_i32 = arith.constant 0 : i32
    %c0_i32_0 = arith.constant 0 : i32
    %c0_i32_1 = arith.constant 0 : i32
    return %c0_i32, %c0_i32_0 : i32, i32
  }
  func.func @transform_3(%arg0: i32, %arg1: i32) -> (i32, i32, i32) {
    %c0_i32 = arith.constant 0 : i32
    %c0_i32_0 = arith.constant 0 : i32
    return %arg0, %c0_i32, %arg1 : i32, i32, i32
  }
}

</mosaic_0001>

<llo_original>
// kernel: tpu_custom_call.1
$region0: #{tpu_custom_call.1}
  #allocation0 [shape = 'u32[]', space=smem, size = 0x4, offset = 0x4, fixed_abs, tag = 'smem constant byte address 0x4 - core index']
  #allocation1 [shape = 'u32[72,128]{1,0:T(1,128)}', space=vmem, size = 0x9000, scoped, tag = 'internal scratch']
  #allocation2 [shape = 'f32[2,8,4]{2,1,0:T(8,128)}', space=vmem, size = 0x2000, scoped, tag = 'scratch operand']
  #allocation3 [shape = 'f32[2,16,4]{2,1,0:T(8,128)}', space=vmem, size = 0x4000, scoped, tag = 'scratch operand']
  %s0 = inlined_call_operand.hbm [shape: f32[4,8,256], index: 0, kind: input, shape index: {}]
  %s1 = inlined_call_operand.hbm [shape: f32[32,25], index: 1, kind: input, shape index: {}]
  %s2 = inlined_call_operand.hbm [shape: f32[16,49], index: 2, kind: input, shape index: {}]
  %s3 = inlined_call_operand.hbm [shape: f32[4,16,256], index: 3, kind: output, shape index: {}]
  %s4 = sld [smem:[#allocation0]]
  $region61: #{tpu_custom_call.1} parent=0
    _
  %s6 = ssub.s32 1, %s4
  %s7 = scalar_select 0, %s6, %s4
  $region1: #{tpu_custom_call.1} parent=0
    #allocation4 [shape = 'u8[16384]{0}', space=vmem, size = 0x4000, scoped, tag = 'input window, operand 0']
    #allocation5 [shape = 's32[2]{0}', space=sflag, size = 0x8, scoped, tag = 'scoped memory for tpu_custom_call.1']
    #allocation6 [shape = 's32[2]{0}', space=sflag, size = 0x8, scoped, tag = 'scoped memory for tpu_custom_call.1']
    #allocation7 [shape = 'u8[16384]{0}', space=vmem, size = 0x4000, scoped, tag = 'input window, operand 1, single buffered']
    #allocation8 [shape = 's32[1]{0}', space=sflag, size = 0x4, scoped, tag = 'scoped memory for tpu_custom_call.1']
    #allocation9 [shape = 'u8[8192]{0}', space=vmem, size = 0x2000, scoped, tag = 'input window, operand 2, single buffered']
    #allocation10 [shape = 'u8[32768]{0}', space=vmem, size = 0x8000, scoped, tag = 'output window, operand 0']
    %8 = vsyncpa [#allocation5], 0
    %s9 = scalar_lea.sflag [#allocation5], 1
    %10 = vsyncpa %s9, 0
    %11 = vsyncpa [#allocation8], 0
    %12 = vsyncpa [#allocation6], 0
    %s13 = scalar_lea.sflag [#allocation6], 1
    %14 = vsyncpa %s13, 0
    loop: start=0, step=1, limit=6
    $region2: #{tpu_custom_call.1} parent=1 // loop_pre_header
      _
    $region3: #{tpu_custom_call.1} parent=1 // loop_header
      %s16 = sphi 0, %s20
      %p17 = scmp.ge.s32.totalorder %s16, 6
      %s23 = sphi 0, %s35
      %s24 = sphi 0, %s31
      %s25 = sphi 0, %s23
      %s26 = sphi 0, %s24
      %s27 = sphi 0, %s25
      %s28 = sphi 0, %s26
      %s40 = sphi 0, %s42
      %s43 = sphi 0, %s40
      %s44 = sphi 0, %s43
      %s60 = sphi 0, %s44
      %s64 = sphi 0, %s64
      %s66 = sphi 0, %s64
      %s67 = sphi 0, %s66
      %s81 = sphi 0, %s67
      %s85 = sphi 0, %s85
      %s87 = sphi 0, %s85
      %s88 = sphi 0, %s87
      %s102 = sphi 0, %s88
      %s110 = sphi 0, %s112
      %s113 = sphi 0, %s110
      %s114 = sphi 0, %s113
      %s130 = sphi 0, %s114
    $region4: #{tpu_custom_call.1} parent=1 // loop_header_branch
      %19 = sbr.rel (%p17) target = $region8
    $region5: #{tpu_custom_call.1} parent=1 // loop_body
      %s21 = ssub.s32 %s16, 1
      %s22 = ssub.s32 %s16, 2
      %s29 = sadd.s32 1, %s24
      %p30 = scmp.ge.s32.totalorder %s29, 2
      %s31 = scalar_select %p30, 0, %s29
      %s32 = sadd.s32 1, %s23
      %s33 = scalar_select %p30, %s32, %s23
      %p34 = scmp.ge.s32.totalorder %s33, 2
      %s35 = scalar_select %p34, 0, %s33
      %s36 = ssub.s32 %s23, %s35
      %s37 = ssub.s32 %s24, %s31
      %s38 = sor.u32 %s36, %s37
      %p39 = scmp.eq.s32.totalorder %s38, 0
      %s41 = sadd.s32 %s40, 1
      %s42 = scalar_select %p39, %s40, %s41
      %p45 = pneg %p39
      %p46 = scmp.eq.s32.totalorder %s16, 3
      %p47 = por %p45, %p46
      %p48 = scmp.ne.s32.totalorder %s40, %s43
      %p49 = scmp.eq.s32.totalorder %s16, 0
      %p50 = por %p48, %p49
      %p51 = scmp.ne.s32.totalorder %s40, %s43
      %p52 = scmp.eq.s32.totalorder %s21, 3
      %p53 = por %p51, %p52
      %p54 = scmp.ne.s32.totalorder %s43, %s44
      %p55 = scmp.eq.s32.totalorder %s21, 0
      %p56 = por %p54, %p55
      %p57 = scmp.ne.s32.totalorder %s43, %s44
      %p58 = scmp.eq.s32.totalorder %s22, 3
      %p59 = por %p57, %p58
      %p61 = scmp.ne.s32.totalorder %s44, %s60
      %p62 = scmp.eq.s32.totalorder %s22, 0
      %p63 = por %p61, %p62
      %s65 = sadd.s32 %s64, 1
      %p68 = scmp.eq.s32.totalorder %s16, 3
      %p69 = scmp.ne.s32.totalorder %s64, %s66
      %p70 = scmp.eq.s32.totalorder %s16, 0
      %p71 = por %p69, %p70
      %p72 = scmp.ne.s32.totalorder %s64, %s66
      %p73 = scmp.eq.s32.totalorder %s21, 3
      %p74 = por %p72, %p73
      %p75 = scmp.ne.s32.totalorder %s66, %s67
      %p76 = scmp.eq.s32.totalorder %s21, 0
      %p77 = por %p75, %p76
      %p78 = scmp.ne.s32.totalorder %s66, %s67
      %p79 = scmp.eq.s32.totalorder %s22, 3
      %p80 = por %p78, %p79
      %p82 = scmp.ne.s32.totalorder %s67, %s81
      %p83 = scmp.eq.s32.totalorder %s22, 0
      %p84 = por %p82, %p83
      %s86 = sadd.s32 %s85, 1
      %p89 = scmp.eq.s32.totalorder %s16, 3
      %p90 = scmp.ne.s32.totalorder %s85, %s87
      %p91 = scmp.eq.s32.totalorder %s16, 0
      %p92 = por %p90, %p91
      %p93 = scmp.ne.s32.totalorder %s85, %s87
      %p94 = scmp.eq.s32.totalorder %s21, 3
      %p95 = por %p93, %p94
      %p96 = scmp.ne.s32.totalorder %s87, %s88
      %p97 = scmp.eq.s32.totalorder %s21, 0
      %p98 = por %p96, %p97
      %p99 = scmp.ne.s32.totalorder %s87, %s88
      %p100 = scmp.eq.s32.totalorder %s22, 3
      %p101 = por %p99, %p100
      %p103 = scmp.ne.s32.totalorder %s88, %s102
      %p104 = scmp.eq.s32.totalorder %s22, 0
      %p105 = por %p103, %p104
      %s106 = ssub.s32 %s23, %s35
      %s107 = ssub.s32 %s24, %s31
      %s108 = sor.u32 %s106, %s107
      %p109 = scmp.eq.s32.totalorder %s108, 0
      %s111 = sadd.s32 %s110, 1
      %s112 = scalar_select %p109, %s110, %s111
      %p115 = pneg %p109
      %p116 = scmp.eq.s32.totalorder %s16, 3
      %p117 = por %p115, %p116
      %p118 = scmp.ne.s32.totalorder %s110, %s113
      %p119 = scmp.eq.s32.totalorder %s16, 0
      %p120 = por %p118, %p119
      %p121 = scmp.ne.s32.totalorder %s110, %s113
      %p122 = scmp.eq.s32.totalorder %s21, 3
      %p123 = por %p121, %p122
      %p124 = scmp.ne.s32.totalorder %s113, %s114
      %p125 = scmp.eq.s32.totalorder %s21, 0
      %p126 = por %p124, %p125
      %p127 = scmp.ne.s32.totalorder %s113, %s114
      %p128 = scmp.eq.s32.totalorder %s22, 3
      %p129 = por %p127, %p128
      %p131 = scmp.ne.s32.totalorder %s114, %s130
      %p132 = scmp.eq.s32.totalorder %s22, 0
      %p133 = por %p131, %p132
      %p134 = scmp.le.s32.totalorder 1, %s16
      %p135 = scmp.lt.s32.totalorder %s16, 5
      %p136 = pnand %p134, %p135
      %p137 = pneg %p136
      // Predicated region
      $region9: #{tpu_custom_call.1} parent=5 // pred_check
        _
      $region10: #{tpu_custom_call.1} parent=5 // pred_check_branch
        %139 = sbr.rel (%p136) target = $region12
      $region11: #{tpu_custom_call.1} parent=5 // pred_region
        %s140 = ssub.s32 %s16, 1
        // Predicated region
        $region13: #{tpu_custom_call.1} parent=11 // pred_check
          %p141 = pneg %p77
        $region14: #{tpu_custom_call.1} parent=11 // pred_check_branch
          %143 = sbr.rel (%p141) target = $region16
        $region15: #{tpu_custom_call.1} parent=11 // pred_region
          %145 = vsyncadd [#allocation8], 0
          %s146 = sshll.u32 %s1, 4
          %s147 = int_to_ptr.hbm [resolvable:$true] %s146
          %s148 = sshll.u32 [#allocation7], 4
          %s149 = int_to_ptr.vmem [resolvable:$true] %s148
          %154 = dma.hbm_to_vmem [thread:$0]  %s147, 512, %s149, [#allocation8], 128, 128, 8
        $region16: #{tpu_custom_call.1} parent=11 // pred_fallthru
          _
        // Predicated region
        $region17: #{tpu_custom_call.1} parent=11 // pred_check
          %p155 = pneg %p98
        $region18: #{tpu_custom_call.1} parent=11 // pred_check_branch
          %157 = sbr.rel (%p155) target = $region20
        $region19: #{tpu_custom_call.1} parent=11 // pred_region
          %159 = vsyncadd [#allocation8], 0
          %s160 = sshll.u32 %s2, 4
          %s161 = int_to_ptr.hbm [resolvable:$true] %s160
          %s162 = sshll.u32 [#allocation9], 4
          %s163 = int_to_ptr.vmem [resolvable:$true] %s162
          %168 = dma.hbm_to_vmem [thread:$0]  %s161, 256, %s163, [#allocation8], 128, 128, 8
        $region20: #{tpu_custom_call.1} parent=11 // pred_fallthru
          _
      $region12: #{tpu_custom_call.1} parent=5 // pred_fallthru
        _
      %p169 = scmp.lt.s32.totalorder %s16, 4
      // Predicated region
      $region21: #{tpu_custom_call.1} parent=5 // pred_check
        %p170 = pneg %p169
      $region22: #{tpu_custom_call.1} parent=5 // pred_check_branch
        %172 = sbr.rel (%p170) target = $region24
      $region23: #{tpu_custom_call.1} parent=5 // pred_region
        // Predicated region
        $region25: #{tpu_custom_call.1} parent=23 // pred_check
          %p173 = pneg %p50
        $region26: #{tpu_custom_call.1} parent=23 // pred_check_branch
          %175 = sbr.rel (%p173) target = $region28
        $region27: #{tpu_custom_call.1} parent=23 // pred_region
          %s176 = sand.u32 %s40, 1
          %s177 = scalar_lea.sflag [#allocation5], %s176
          %s178 = sand.u32 %s40, 1
          %s179 = smul.addr %s178, 16
          %s180 = scalar_lea.vmem [#allocation4], %s179
          %s181 = smul.u32 2, %s23
          %183 = vsyncadd %s177, 0
          %s184 = smul.addr %s181, 2
          %s185 = sadd.s32 %s24, %s184
          %s186 = smul.addr %s185, 8
          %s187 = scalar_lea.hbm %s0, %s186
          %s188 = sshll.u32 %s187, 4
          %s189 = int_to_ptr.hbm [resolvable:$true] %s188
          %s190 = sshll.u32 %s180, 4
          %s191 = int_to_ptr.vmem [resolvable:$true] %s190
          %196 = dma.hbm_to_vmem [thread:$0]  %s189, 256, %s191, %s177, 256, 128, 8
        $region28: #{tpu_custom_call.1} parent=23 // pred_fallthru
          _
      $region24: #{tpu_custom_call.1} parent=5 // pred_fallthru
        _
      %p197 = scmp.le.s32.totalorder 1, %s16
      %p198 = scmp.lt.s32.totalorder %s16, 5
      %p199 = pnand %p197, %p198
      %p200 = pneg %p199
      // Predicated region
      $region29: #{tpu_custom_call.1} parent=5 // pred_check
        _
      $region30: #{tpu_custom_call.1} parent=5 // pred_check_branch
        %202 = sbr.rel (%p199) target = $region32
      $region31: #{tpu_custom_call.1} parent=5 // pred_region
        %s203 = ssub.s32 %s16, 1
        %s204 = sand.u32 %s43, 1
        %s205 = scalar_lea.sflag [#allocation5], %s204
        %s206 = sand.u32 %s43, 1
        %s207 = smul.addr %s206, 16
        %s208 = scalar_lea.vmem [#allocation4], %s207
        // Predicated region
        $region33: #{tpu_custom_call.1} parent=31 // pred_check
          %p209 = pneg %p56
        $region34: #{tpu_custom_call.1} parent=31 // pred_check_branch
          %211 = sbr.rel (%p209) target = $region36
        $region35: #{tpu_custom_call.1} parent=31 // pred_region
          %213 = dma.done %s205, 256
        $region36: #{tpu_custom_call.1} parent=31 // pred_fallthru
          _
        // Predicated region
        $region37: #{tpu_custom_call.1} parent=31 // pred_check
          %p214 = pneg %p77
        $region38: #{tpu_custom_call.1} parent=31 // pred_check_branch
          %216 = sbr.rel (%p214) target = $region40
        $region39: #{tpu_custom_call.1} parent=31 // pred_region
          %218 = dma.done [#allocation8], 512
        $region40: #{tpu_custom_call.1} parent=31 // pred_fallthru
          _
        // Predicated region
        $region41: #{tpu_custom_call.1} parent=31 // pred_check
          %p219 = pneg %p98
        $region42: #{tpu_custom_call.1} parent=31 // pred_check_branch
          %221 = sbr.rel (%p219) target = $region44
        $region43: #{tpu_custom_call.1} parent=31 // pred_region
          %223 = dma.done [#allocation8], 256
        $region44: #{tpu_custom_call.1} parent=31 // pred_fallthru
          _
        %s224 = sand.u32 %s43, 1
        %s225 = scalar_lea.sflag [#allocation5], %s224
        %s226 = sand.u32 %s43, 1
        %s227 = smul.addr %s226, 16
        %s228 = scalar_lea.vmem [#allocation4], %s227
        %p229 = pneg %p56
        %p230 = pneg %p53
        %p231 = pneg %p77
        %p232 = pneg %p74
        %p233 = pneg %p98
        %p234 = pneg %p95
        %p235 = pneg %p126
        %p236 = pneg %p123
        %s237 = sand.u32 %s113, 1
        %s238 = scalar_lea.sflag [#allocation6], %s237
        %s239 = sand.u32 %s113, 1
        %s240 = smul.addr %s239, 32
        %s241 = scalar_lea.vmem [#allocation10], %s240
        %s242 = smul.u32 2, %s25
        %s243 = smul.u32 2, %s25
        %p244 = scmp.eq.s32.totalorder %s26, 0
        // Predicated region
        $region45: #{tpu_custom_call.1} parent=31 // pred_check
          %p245 = pneg %p244
        $region46: #{tpu_custom_call.1} parent=31 // pred_check_branch
          %247 = sbr.rel (%p245) target = $region48
        $region47: #{tpu_custom_call.1} parent=31 // pred_region
          %vm248 = vcmask 31744
          %249 = vst.msk [vmem:[#allocation2] sm:$0xff] %vm248, 0.0
          %250 = vst.msk [vmem:[#allocation2 + $0x8] sm:$0xff] %vm248, 0.0
          %251 = vst.msk [vmem:[#allocation3] sm:$0xff] %vm248, 0.0
          %252 = vst.msk [vmem:[#allocation3 + $0x8] sm:$0xff] %vm248, 0.0
          %253 = vst.msk [vmem:[#allocation3 + $0x10] sm:$0xff] %vm248, 0.0
          %254 = vst.msk [vmem:[#allocation3 + $0x18] sm:$0xff] %vm248, 0.0
        $region48: #{tpu_custom_call.1} parent=31 // pred_fallthru
          _
        %v255 = vld [vmem:[#allocation7] sm:$0xff]
        %v256 = vld [vmem:[#allocation7 + $0x8] sm:$0xff]
        %v257 = vld [vmem:[#allocation7 + $0x10] sm:$0xff]
        %v258 = vld [vmem:[#allocation7 + $0x18] sm:$0xff]
        %v259 = vld [vmem:[#allocation9] sm:$0xff]
        %v260 = vld [vmem:[#allocation9 + $0x8] sm:$0xff]
        %v261 = vld [vmem:[%s208] sm:$0xff]
        %s262 = scalar_lea.vmem %s208, 8 [#allocation4]
        %v263 = vld [vmem:[%s262] sm:$0xff]
        %v264 = vld [vmem:[#allocation2] sm:$0xff]
        %s265 = scalar_lea.vmem [#allocation2], 8
        %v266 = vld [vmem:[%s265] sm:$0xff]
        %268 = vrot.lane.b32.xlu0 %v261, 4
        %v269 = vpop.permute.xlu0 %268
        %vm271 = vcmask 31744
        %v272 = vsel %vm271, %v264, %v269
        %274 = vrot.lane.b32.xlu0 %v263, 4
        %v275 = vpop.permute.xlu0 %274
        %v277 = vsel %vm271, %v266, %v275
        %279 = vrot.lane.b32.xlu0 %v264, 126
        %v280 = vpop.permute.xlu0 %279
        %282 = vrot.lane.b32.xlu0 %v261, 2
        %v283 = vpop.permute.xlu0 %282
        %vm285 = vcmask 15360
        %v286 = vsel %vm285, %v280, %v283
        %288 = vrot.lane.b32.xlu0 %v266, 126
        %v289 = vpop.permute.xlu0 %288
        %291 = vrot.lane.b32.xlu0 %v263, 2
        %v292 = vpop.permute.xlu0 %291
        %v294 = vsel %vm285, %v289, %v292
        %vm295 = vcmask 203776
        %v297 = vsel %vm295, %v255, 0
        %v300 = vsel %vm295, %v256, 0
        %v303 = vsel %vm295, %v257, 0
        %v306 = vsel %vm295, %v258, 0
        %vm308 = vcmask 1040384
        %v310 = vsel %vm308, 1.0, 0
        %312 = vmatpush.msra.mxu0 0.0
        %313 = vmatpush.msra.mxu0 0.0
        %314 = vmatpush.msra.mxu0 0.0
        %315 = vmatpush.msra.mxu0 0.0
        %316 = vmatpush.msra.mxu0 0.0
        %317 = vmatpush.msra.mxu0 0.0
        %318 = vmatpush.msra.mxu0 0.0
        %319 = vmatpush.msra.mxu0 0.0
        %320 = vmatpush.msra.mxu0 0.0
        %321 = vmatpush.msra.mxu0 0.0
        %322 = vmatpush.msra.mxu0 0.0
        %323 = vmatpush.msra.mxu0 0.0
        %324 = vmatpush.msra.mxu0 %v310
        %325 = vmatpush.msra.mxu0 %v261
        %326 = vmatpush.msra.mxu0 %v286
        %327 = vmatpush.msra.mxu0 %v272
        %328 = vmatmul.f32.gmra.mxu0 %v297
        %v329 = vpop.f32.mrf.mxu0
        %v330 = vadd.f32 0.0, %v329
        %331 = vmatmul.f32.gmra.mxu0 %v300
        %v332 = vpop.f32.mrf.mxu0
        %v333 = vadd.f32 0.0, %v332
        %334 = vmatmul.f32.gmra.mxu0 %v303
        %v335 = vpop.f32.mrf.mxu0
        %v336 = vadd.f32 0.0, %v335
        %337 = vmatmul.f32.gmra.mxu0 %v306
        %v338 = vpop.f32.mrf.mxu0
        %v339 = vadd.f32 0.0, %v338
        %340 = vdwg.mxu0
        %341 = vmatpush.msra.mxu0 0.0
        %342 = vmatpush.msra.mxu0 0.0
        %343 = vmatpush.msra.mxu0 0.0
        %344 = vmatpush.msra.mxu0 0.0
        %345 = vmatpush.msra.mxu0 0.0
        %346 = vmatpush.msra.mxu0 0.0
        %347 = vmatpush.msra.mxu0 0.0
        %348 = vmatpush.msra.mxu0 0.0
        %349 = vmatpush.msra.mxu0 0.0
        %350 = vmatpush.msra.mxu0 0.0
        %351 = vmatpush.msra.mxu0 0.0
        %352 = vmatpush.msra.mxu0 0.0
        %353 = vmatpush.msra.mxu0 %v310
        %354 = vmatpush.msra.mxu0 %v263
        %355 = vmatpush.msra.mxu0 %v294
        %356 = vmatpush.msra.mxu0 %v277
        %357 = vmatmul.f32.gmra.mxu0 %v297
        %v358 = vpop.f32.mrf.mxu0
        %v359 = vadd.f32 0.0, %v358
        %360 = vmatmul.f32.gmra.mxu0 %v300
        %v361 = vpop.f32.mrf.mxu0
        %v362 = vadd.f32 0.0, %v361
        %363 = vmatmul.f32.gmra.mxu0 %v303
        %v364 = vpop.f32.mrf.mxu0
        %v365 = vadd.f32 0.0, %v364
        %366 = vmatmul.f32.gmra.mxu0 %v306
        %v367 = vpop.f32.mrf.mxu0
        %v368 = vadd.f32 0.0, %v367
        %369 = vdwg.mxu0
        %v370 = vmax.f32 %v330, 0.0
        %v371 = vmax.f32 %v359, 0.0
        %v372 = vmax.f32 %v333, 0.0
        %v373 = vmax.f32 %v362, 0.0
        %v374 = vld [vmem:[#allocation3] sm:$0xff]
        %v375 = vld [vmem:[#allocation3 + $0x8] sm:$0xff]
        %s376 = scalar_lea.vmem [#allocation3], 16
        %v377 = vld [vmem:[%s376] sm:$0xff]
        %v378 = vld [vmem:[%s376 + $0x8] sm:$0xff]
        %381 = vrot.lane.b32.xlu0 %v370, 4
        %v382 = vpop.permute.xlu0 %381
        %383 = vrot.lane.b32.xlu0 %v372, 4
        %v384 = vpop.permute.xlu0 %383
        %v387 = vsel %vm271, %v374, %v382
        %v388 = vsel %vm271, %v375, %v384
        %391 = vrot.lane.b32.xlu0 %v371, 4
        %v392 = vpop.permute.xlu0 %391
        %393 = vrot.lane.b32.xlu0 %v373, 4
        %v394 = vpop.permute.xlu0 %393
        %v397 = vsel %vm271, %v377, %v392
        %v398 = vsel %vm271, %v378, %v394
        %401 = vrot.lane.b32.xlu0 %v374, 126
        %v402 = vpop.permute.xlu0 %401
        %403 = vrot.lane.b32.xlu0 %v375, 126
        %v404 = vpop.permute.xlu0 %403
        %407 = vrot.lane.b32.xlu0 %v370, 2
        %v408 = vpop.permute.xlu0 %407
        %409 = vrot.lane.b32.xlu0 %v372, 2
        %v410 = vpop.permute.xlu0 %409
        %v413 = vsel %vm285, %v402, %v408
        %v414 = vsel %vm285, %v404, %v410
        %417 = vrot.lane.b32.xlu0 %v377, 126
        %v418 = vpop.permute.xlu0 %417
        %419 = vrot.lane.b32.xlu0 %v378, 126
        %v420 = vpop.permute.xlu0 %419
        %423 = vrot.lane.b32.xlu0 %v371, 2
        %v424 = vpop.permute.xlu0 %423
        %425 = vrot.lane.b32.xlu0 %v373, 2
        %v426 = vpop.permute.xlu0 %425
        %v429 = vsel %vm285, %v418, %v424
        %v430 = vsel %vm285, %v420, %v426
        %vm431 = vcmask 400384
        %v433 = vsel %vm431, %v259, 0
        %v436 = vsel %vm431, %v260, 0
        %438 = vmatpush.msra.mxu0 0.0
        %439 = vmatpush.msra.mxu0 0.0
        %440 = vmatpush.msra.mxu0 0.0
        %441 = vmatpush.msra.mxu0 0.0
        %442 = vmatpush.msra.mxu0 0.0
        %443 = vmatpush.msra.mxu0 0.0
        %444 = vmatpush.msra.mxu0 0.0
        %445 = vmatpush.msra.mxu0 0.0
        %446 = vmatpush.msra.mxu0 0.0
        %447 = vmatpush.msra.mxu0 %v310
        %448 = vmatpush.msra.mxu0 %v372
        %449 = vmatpush.msra.mxu0 %v370
        %450 = vmatpush.msra.mxu0 %v414
        %451 = vmatpush.msra.mxu0 %v413
        %452 = vmatpush.msra.mxu0 %v388
        %453 = vmatpush.msra.mxu0 %v387
        %454 = vmatmul.f32.gmra.mxu0 %v433
        %v455 = vpop.f32.mrf.mxu0
        %v456 = vadd.f32 0.0, %v455
        %457 = vmatmul.f32.gmra.mxu0 %v436
        %v458 = vpop.f32.mrf.mxu0
        %v459 = vadd.f32 0.0, %v458
        %460 = vdwg.mxu0
        %461 = vmatpush.msra.mxu0 0.0
        %462 = vmatpush.msra.mxu0 0.0
        %463 = vmatpush.msra.mxu0 0.0
        %464 = vmatpush.msra.mxu0 0.0
        %465 = vmatpush.msra.mxu0 0.0
        %466 = vmatpush.msra.mxu0 0.0
        %467 = vmatpush.msra.mxu0 0.0
        %468 = vmatpush.msra.mxu0 0.0
        %469 = vmatpush.msra.mxu0 0.0
        %470 = vmatpush.msra.mxu0 %v310
        %471 = vmatpush.msra.mxu0 %v373
        %472 = vmatpush.msra.mxu0 %v371
        %473 = vmatpush.msra.mxu0 %v430
        %474 = vmatpush.msra.mxu0 %v429
        %475 = vmatpush.msra.mxu0 %v398
        %476 = vmatpush.msra.mxu0 %v397
        %477 = vmatmul.f32.gmra.mxu0 %v433
        %v478 = vpop.f32.mrf.mxu0
        %v479 = vadd.f32 0.0, %v478
        %480 = vmatmul.f32.gmra.mxu0 %v436
        %v481 = vpop.f32.mrf.mxu0
        %v482 = vadd.f32 0.0, %v481
        %483 = vdwg.mxu0
        %v484 = vmax.f32 %v456, 0.0
        %v485 = vmax.f32 %v479, 0.0
        %v486 = vmax.f32 %v459, 0.0
        %v487 = vmax.f32 %v482, 0.0
        %v488 = vadd.f32 %v484, %v336
        %v489 = vadd.f32 %v485, %v365
        %v490 = vadd.f32 %v486, %v339
        %v491 = vadd.f32 %v487, %v368
        %v492 = vmax.f32 %v488, 0.0
        %v493 = vmax.f32 %v489, 0.0
        %v494 = vmax.f32 %v490, 0.0
        %v495 = vmax.f32 %v491, 0.0
        %496 = vst [vmem:[%s241] sm:$0xff] %v492
        %497 = vst [vmem:[%s241 + $0x8] sm:$0xff] %v494
        %s498 = scalar_lea.vmem %s241, 16 [#allocation10]
        %499 = vst [vmem:[%s498] sm:$0xff] %v493
        %500 = vst [vmem:[%s498 + $0x8] sm:$0xff] %v495
        %v501 = vld [vmem:[%s208] sm:$0xff]
        %503 = vrot.lane.b32.xlu0 %v501, 4
        %v504 = vpop.permute.xlu0 %503
        %506 = vst.msk [vmem:[#allocation2] sm:$0xff] %vm271, %v504
        %507 = vst.msk [vmem:[#allocation3] sm:$0xff] %vm271, %v382
        %508 = vst.msk [vmem:[#allocation3 + $0x8] sm:$0xff] %vm271, %v384
        %v509 = vld [vmem:[%s262] sm:$0xff]
        %511 = vrot.lane.b32.xlu0 %v509, 4
        %v512 = vpop.permute.xlu0 %511
        %514 = vst.msk [vmem:[%s265] sm:$0xff] %vm271, %v512
        %515 = vst.msk [vmem:[%s376] sm:$0xff] %vm271, %v392
        %516 = vst.msk [vmem:[%s376 + $0x8] sm:$0xff] %vm271, %v394
        %s517 = sand.u32 %s113, 1
        %s518 = scalar_lea.sflag [#allocation6], %s517
        %s519 = sand.u32 %s113, 1
        %s520 = smul.addr %s519, 32
        %s521 = scalar_lea.vmem [#allocation10], %s520
        // Predicated region
        $region49: #{tpu_custom_call.1} parent=31 // pred_check
          %p522 = pneg %p123
        $region50: #{tpu_custom_call.1} parent=31 // pred_check_branch
          %524 = sbr.rel (%p522) target = $region52
        $region51: #{tpu_custom_call.1} parent=31 // pred_region
          %s525 = smul.u32 2, %s25
          %527 = vsyncadd %s518, 0
          %s528 = smul.addr %s525, 4
          %s529 = sadd.s32 %s26, %s528
          %s530 = smul.addr %s529, 8
          %s531 = scalar_lea.hbm %s3, %s530
          %s532 = sshll.u32 %s521, 4
          %s533 = int_to_ptr.vmem [resolvable:$true] %s532
          %s534 = sshll.u32 %s531, 4
          %s535 = int_to_ptr.hbm [resolvable:$true] %s534
          %540 = dma.vmem_to_hbm [thread:$0]  %s533, 512, %s535, %s518, 128, 256, 8
        $region52: #{tpu_custom_call.1} parent=31 // pred_fallthru
          _
      $region32: #{tpu_custom_call.1} parent=5 // pred_fallthru
        _
      %p541 = scmp.le.s32.totalorder 2, %s16
      // Predicated region
      $region53: #{tpu_custom_call.1} parent=5 // pred_check
        %p542 = pneg %p541
      $region54: #{tpu_custom_call.1} parent=5 // pred_check_branch
        %544 = sbr.rel (%p542) target = $region56
      $region55: #{tpu_custom_call.1} parent=5 // pred_region
        %s545 = ssub.s32 %s16, 2
        // Predicated region
        $region57: #{tpu_custom_call.1} parent=55 // pred_check
          %p546 = pneg %p129
        $region58: #{tpu_custom_call.1} parent=55 // pred_check_branch
          %548 = sbr.rel (%p546) target = $region60
        $region59: #{tpu_custom_call.1} parent=55 // pred_region
          %s549 = sand.u32 %s114, 1
          %s550 = scalar_lea.sflag [#allocation6], %s549
          %s551 = sand.u32 %s114, 1
          %s552 = smul.addr %s551, 32
          %s553 = scalar_lea.vmem [#allocation10], %s552
          %555 = dma.done %s550, 512
        $region60: #{tpu_custom_call.1} parent=55 // pred_fallthru
          _
      $region56: #{tpu_custom_call.1} parent=5 // pred_fallthru
        _
    $region6: #{tpu_custom_call.1} parent=1 // loop_footer
      %s20 = sadd.s32 1, %s16
    $region7: #{tpu_custom_call.1} parent=1 // loop_footer_branch
      %15 = sbr.rel target = $region3
    $region8: #{tpu_custom_call.1} parent=1 // loop_exit
      _
    %556 = vsyncpa [#allocation5], 1
    %s557 = scalar_lea.sflag [#allocation5], 1
    %558 = vsyncpa %s557, 1
    %559 = vsyncpa [#allocation8], 1
    %560 = vsyncpa [#allocation6], 1
    %s561 = scalar_lea.sflag [#allocation6], 1
    %562 = vsyncpa %s561, 1

</llo_original>
